<compile_context>
chip_gen: v6e
topology: v6e:2x2x1
jax: 0.10.0
libtpu: 0.0.40
codegen_flags: <defaults>
</compile_context>

<pallas_src>
import math

import jax
import jax.numpy as jnp
from jax.experimental import pallas as pl
from jax.experimental.pallas import tpu as pltpu


def _round_up(x, m):
    return ((x + m - 1) // m) * m


def _bt_tile_kernel(beta_i_ref, alpha_i_ref, alpha_j_ref, win_ref, out_ref):
    # beta_i_ref:  (TM, 1)   beta[i] along sublanes
    # alpha_i_ref: (TM, 1)   exp(beta[i]) along sublanes
    # alpha_j_ref: (1, TN)   exp(beta[j]) along lanes
    # win_ref:     (TM, TN)  win counts (bf16/int8/f32 -> upcast to f32)
    # out_ref:     (8, TN)   per-i-tile lane-dense partial sums; block index
    #                        is (i, 0), constant over j -> acts as accumulator
    j = pl.program_id(1)

    @pl.when(j == 0)
    def _():
        out_ref[...] = jnp.zeros_like(out_ref)

    beta_i = beta_i_ref[...]                                   # (TM, 1)
    alpha_i = alpha_i_ref[...]                                 # (TM, 1)
    alpha_j = alpha_j_ref[...]                                 # (1, TN)

    # log(alpha_i / (alpha_i + alpha_j)) = beta_i - log(alpha_i + alpha_j)
    log_term = beta_i - jnp.log(alpha_i + alpha_j)             # (TM, TN)
    contrib = win_ref[...].astype(jnp.float32) * log_term      # (TM, TN)

    tm, tn = contrib.shape
    # Fold TM sublanes down to 8 (sublane-split reshape is layout-free; the
    # reduce is plain VPU adds) — lanes stay dense, no cross-lane reduce.
    out_ref[...] += jnp.sum(contrib.reshape(tm // 8, 8, tn), axis=0)


def bradley_terry_loss(betas, win_matrix, *, tile_m=512, tile_n=2048,
                       win_dtype=jnp.bfloat16):
    """betas: (N,), win_matrix: (N, N). Returns scalar f32 loss (= -log-lik).

    win_dtype: dtype used to stream the O(N^2) win matrix through the kernel.
      bfloat16 is exact for integer win counts <= 256 and halves HBM traffic
      on v5e/v6e; pass None to keep the input dtype untouched.
    """
    n = win_matrix.shape[0]
    assert betas.shape == (n,)
    assert win_matrix.shape == (n, n)

    betas_f32 = betas.astype(jnp.float32)
    alpha = jnp.exp(betas_f32)

    # Diagonal terms (excluded in the reference) sum to -log(2)*trace(W):
    # correct analytically (O(N)) instead of masking per element in-kernel.
    diag_corr = jnp.float32(math.log(2.0)) * jnp.sum(
        jnp.diagonal(win_matrix).astype(jnp.float32))

    # --- tiling -------------------------------------------------------------
    n_i = _round_up(n, 8)
    n_j = _round_up(n, 128)

    tm = max(8, (min(tile_m, n_i) // 8) * 8)
    # Prefer >= 2 i-tiles so v7x's two TensorCores both get work on the
    # "parallel" axis (no effect on single-TC v5e/v6e).
    if n_i // tm < 2:
        half = _round_up((n_i + 1) // 2, 8)
        if half < n_i:
            tm = half
    n_i = _round_up(n_i, tm)

    tn = max(128, (min(tile_n, n_j) // 128) * 128)
    n_j = _round_up(n_j, tn)

    grid_i = n_i // tm
    grid_j = n_j // tn
    pad_i = n_i - n
    pad_j = n_j - n

    # --- O(N) side inputs (pad beta with 0 / alpha with 1 => finite log) ----
    beta_col = jnp.zeros((n_i, 1), jnp.float32).at[:n, 0].set(betas_f32)
    alpha_col = jnp.ones((n_i, 1), jnp.float32).at[:n, 0].set(alpha)
    alpha_row = jnp.ones((1, n_j), jnp.float32).at[0, :n].set(alpha)

    # --- win: at most one fused cast+pad pass; zero copies if aligned -------
    stream_dtype = win_matrix.dtype if win_dtype is None else win_dtype
    win_k = win_matrix
    if win_k.dtype != stream_dtype:
        win_k = win_k.astype(stream_dtype)
    if pad_i or pad_j:
        win_k = jnp.pad(win_k, ((0, pad_i), (0, pad_j)))

    partials = pl.pallas_call(
        _bt_tile_kernel,
        out_shape=jax.ShapeDtypeStruct((grid_i * 8, tn), jnp.float32),
        grid_spec=pltpu.PrefetchScalarGridSpec(
            num_scalar_prefetch=0,
            grid=(grid_i, grid_j),
            in_specs=[
                pl.BlockSpec((tm, 1), lambda i, j: (i, 0)),     # beta[i] col
                pl.BlockSpec((tm, 1), lambda i, j: (i, 0)),     # alpha[i] col
                pl.BlockSpec((1, tn), lambda i, j: (0, j)),     # alpha[j] row
                pl.BlockSpec((tm, tn), lambda i, j: (i, j)),    # win tile
            ],
            out_specs=pl.BlockSpec((8, tn), lambda i, j: (i, 0)),
        ),
        compiler_params=pltpu.CompilerParams(
            dimension_semantics=("parallel", "arbitrary"),
            # v5e's scoped default is only 16 MiB; keep <= ~48 MiB for v7x.
            vmem_limit_bytes=32 * 1024 * 1024,
        ),
    )(beta_col, alpha_col, alpha_row, win_k)

    return -jnp.sum(partials) - diag_corr


def _reference_loss(betas, win_matrix):
    # Pure-JAX reference mirroring the PyTorch double loop.
    alpha = jnp.exp(betas)
    n = betas.shape[0]
    log_term = jnp.log(alpha[:, None] / (alpha[:, None] + alpha[None, :]))
    mask = ~jnp.eye(n, dtype=bool)
    return -jnp.sum(jnp.where(mask, win_matrix * log_term, 0.0))


if __name__ == "__main__":
    key = jax.random.PRNGKey(0)
    k_beta, k_win, k_beta2, k_win2 = jax.random.split(key, 4)

    loss_fn = jax.jit(bradley_terry_loss,
                      static_argnames=("tile_m", "tile_n", "win_dtype"))

    # --- demo size matching the module (num_players = 8) --------------------
    num_players = 8
    betas = jnp.ones((num_players,), jnp.float32) + 0.1 * jax.random.normal(
        k_beta, (num_players,), jnp.float32
    )
    win_matrix = jax.random.randint(
        k_win, (num_players, num_players), 0, 10
    ).astype(jnp.float32)

    ref = _reference_loss(betas, win_matrix)

    loss = loss_fn(betas, win_matrix)                       # bf16 win stream
    jax.block_until_ready(loss)
    assert jnp.allclose(loss, ref, rtol=1e-5, atol=1e-4), (loss, ref)

    loss_f32 = loss_fn(betas, win_matrix, win_dtype=None)   # f32 win stream
    jax.block_until_ready(loss_f32)
    assert jnp.allclose(loss_f32, ref, rtol=1e-5, atol=1e-4), (loss_f32, ref)

    # --- multi-tile sanity check (grid, padding, in-place accumulation) -----
    n2 = 160
    betas2 = 1.0 + 0.1 * jax.random.normal(k_beta2, (n2,), jnp.float32)
    win2 = jax.random.randint(k_win2, (n2, n2), 0, 10).astype(jnp.float32)
    ref2 = _reference_loss(betas2, win2)

    loss2 = loss_fn(betas2, win2, tile_m=64, tile_n=128)
    jax.block_until_ready(loss2)
    assert jnp.allclose(loss2, ref2, rtol=1e-5, atol=1e-4), (loss2, ref2)

    # Default tiling path: tm auto-shrunk so grid_i == 2 (v7x megacore split).
    loss3 = loss_fn(betas2, win2)
    jax.block_until_ready(loss3)
    assert jnp.allclose(loss3, ref2, rtol=1e-5, atol=1e-4), (loss3, ref2)

    print("KERNEL_OK")
</pallas_src>

<mosaic_0001>
module attributes {stable_mosaic.version = 11 : i64} {
  func.func @_bt_tile_kernel(%arg0: i32, %arg1: i32, %arg2: memref<8x1xf32, #tpu.memory_space<vmem>>, %arg3: memref<8x1xf32, #tpu.memory_space<vmem>>, %arg4: memref<1x128xf32, #tpu.memory_space<vmem>>, %arg5: memref<8x128xbf16, #tpu.memory_space<vmem>>, %arg6: memref<8x128xf32, #tpu.memory_space<vmem>>) attributes {dimension_semantics = [#tpu.dimension_semantics<parallel>, #tpu.dimension_semantics<arbitrary>], iteration_bounds = array<i64: 1, 1>, scalar_prefetch = 0 : i64, scratch_operands = 0 : i64, tpu.core_type = #tpu.core_type<tc>, window_params = [{transform_indices = @transform_0, window_bounds = array<i64: 8, 1>}, {transform_indices = @transform_1, window_bounds = array<i64: 8, 1>}, {transform_indices = @transform_2, window_bounds = array<i64: 1, 128>}, {transform_indices = @transform_3, window_bounds = array<i64: 8, 128>}, {transform_indices = @transform_4, window_bounds = array<i64: 8, 128>}]} {
    %c0_i32 = arith.constant 0 : i32
    %0 = arith.cmpi eq, %arg1, %c0_i32 : i32
    %1 = arith.extui %0 : i1 to i32
    %c0_i32_0 = arith.constant 0 : i32
    %2 = arith.cmpi ne, %1, %c0_i32_0 : i32
    scf.if %2 {
      %cst_12 = arith.constant 0.000000e+00 : f32
      %20 = vector.broadcast %cst_12 : f32 to vector<8x128xf32>
      %c0_13 = arith.constant 0 : index
      %c0_14 = arith.constant 0 : index
      %21 = vector.load %arg6[%c0_13, %c0_14] : memref<8x128xf32, #tpu.memory_space<vmem>>, vector<8x128xf32>
      tpu.vector_store %arg6[%c0_13, %c0_14], %20 {strides = array<i32>} : memref<8x128xf32, #tpu.memory_space<vmem>>, vector<8x128xf32>,
    } else {
    }
    %c0 = arith.constant 0 : index
    %c0_1 = arith.constant 0 : index
    %3 = vector.load %arg2[%c0, %c0_1] : memref<8x1xf32, #tpu.memory_space<vmem>>, vector<8x1xf32>
    %c0_2 = arith.constant 0 : index
    %c0_3 = arith.constant 0 : index
    %4 = vector.load %arg3[%c0_2, %c0_3] : memref<8x1xf32, #tpu.memory_space<vmem>>, vector<8x1xf32>
    %c0_4 = arith.constant 0 : index
    %c0_5 = arith.constant 0 : index
    %5 = vector.load %arg4[%c0_4, %c0_5] : memref<1x128xf32, #tpu.memory_space<vmem>>, vector<1x128xf32>
    %6 = vector.broadcast %4 : vector<8x1xf32> to vector<8x128xf32>
    %7 = vector.broadcast %5 : vector<1x128xf32> to vector<8x128xf32>
    %8 = arith.addf %6, %7 : vector<8x128xf32>
    %9 = math.log %8 : vector<8x128xf32>
    %10 = vector.broadcast %3 : vector<8x1xf32> to vector<8x128xf32>
    %11 = arith.subf %10, %9 : vector<8x128xf32>
    %c0_6 = arith.constant 0 : index
    %c0_7 = arith.constant 0 : index
    %12 = vector.load %arg5[%c0_6, %c0_7] : memref<8x128xbf16, #tpu.memory_space<vmem>>, vector<8x128xbf16>
    %13 = arith.extf %12 : vector<8x128xbf16> to vector<8x128xf32>
    %14 = arith.mulf %13, %11 : vector<8x128xf32>
    %c0_8 = arith.constant 0 : index
    %c0_9 = arith.constant 0 : index
    %15 = vector.load %arg6[%c0_8, %c0_9] : memref<8x128xf32, #tpu.memory_space<vmem>>, vector<8x128xf32>
    %16 = vector.shape_cast %14 : vector<8x128xf32> to vector<1x8x128xf32>
    %cst = arith.constant dense<0.000000e+00> : vector<8x128xf32>
    %17 = vector.multi_reduction <add>, %16, %cst [0] : vector<1x8x128xf32> to vector<8x128xf32>
    %18 = arith.addf %15, %17 : vector<8x128xf32>
    %c0_10 = arith.constant 0 : index
    %c0_11 = arith.constant 0 : index
    %19 = vector.load %arg6[%c0_10, %c0_11] : memref<8x128xf32, #tpu.memory_space<vmem>>, vector<8x128xf32>
    tpu.vector_store %arg6[%c0_10, %c0_11], %18 {strides = array<i32>} : memref<8x128xf32, #tpu.memory_space<vmem>>, vector<8x128xf32>,
    return
  }
  func.func @transform_0(%arg0: i32, %arg1: i32) -> (i32, i32) {
    %c0_i32 = arith.constant 0 : i32
    %c0_i32_0 = arith.constant 0 : i32
    return %arg0, %c0_i32 : i32, i32
  }
  func.func @transform_1(%arg0: i32, %arg1: i32) -> (i32, i32) {
    %c0_i32 = arith.constant 0 : i32
    %c0_i32_0 = arith.constant 0 : i32
    return %arg0, %c0_i32 : i32, i32
  }
  func.func @transform_2(%arg0: i32, %arg1: i32) -> (i32, i32) {
    %c0_i32 = arith.constant 0 : i32
    %c0_i32_0 = arith.constant 0 : i32
    return %c0_i32, %arg1 : i32, i32
  }
  func.func @transform_3(%arg0: i32, %arg1: i32) -> (i32, i32) {
    %c0_i32 = arith.constant 0 : i32
    return %arg0, %arg1 : i32, i32
  }
  func.func @transform_4(%arg0: i32, %arg1: i32) -> (i32, i32) {
    %c0_i32 = arith.constant 0 : i32
    %c0_i32_0 = arith.constant 0 : i32
    return %arg0, %c0_i32 : i32, i32
  }
}

</mosaic_0001>

<llo_original>
// kernel: bradley_terry_loss.1
$region0: #{bradley_terry_loss.1}
  #allocation0 [shape = 'u32[]', space=smem, size = 0x4, offset = 0x4, fixed_abs, tag = 'smem constant byte address 0x4 - core index']
  #allocation1 [shape = 'u32[144,128]{1,0:T(1,128)}', space=vmem, size = 0x12000, scoped, tag = 'internal scratch']
  %s0 = inlined_call_operand.vmem [shape: f32[8,1], index: 0, kind: input, shape index: {}]
  %s1 = inlined_call_operand.vmem [shape: f32[8,1], index: 1, kind: input, shape index: {}]
  %s2 = inlined_call_operand.vmem [shape: f32[1,128], index: 2, kind: input, shape index: {}]
  %s3 = inlined_call_operand.vmem [shape: bf16[8,128], index: 3, kind: input, shape index: {}]
  %s4 = inlined_call_operand.vmem [shape: f32[8,128], index: 4, kind: output, shape index: {}]
  %s5 = sld [smem:[#allocation0]]
  $region30: #{bradley_terry_loss.1} parent=0
    _
  %s7 = ssub.s32 1, %s5
  %s8 = scalar_select 0, %s7, %s5
  // Predicated region
  $region2: #{bradley_terry_loss.1} parent=0 // pred_check
    _
  $region3: #{bradley_terry_loss.1} parent=0 // pred_check_branch
    %10 = sbr.rel (0) target = $region5
  $region4: #{bradley_terry_loss.1} parent=0 // pred_region
    _
  $region5: #{bradley_terry_loss.1} parent=0 // pred_fallthru
    _
  // Predicated region
  $region6: #{bradley_terry_loss.1} parent=0 // pred_check
    _
  $region7: #{bradley_terry_loss.1} parent=0 // pred_check_branch
    %12 = sbr.rel (0) target = $region9
  $region8: #{bradley_terry_loss.1} parent=0 // pred_region
    _
  $region9: #{bradley_terry_loss.1} parent=0 // pred_fallthru
    _
  // Predicated region
  $region10: #{bradley_terry_loss.1} parent=0 // pred_check
    _
  $region11: #{bradley_terry_loss.1} parent=0 // pred_check_branch
    %14 = sbr.rel (0) target = $region13
  $region12: #{bradley_terry_loss.1} parent=0 // pred_region
    _
  $region13: #{bradley_terry_loss.1} parent=0 // pred_fallthru
    _
  // Predicated region
  $region14: #{bradley_terry_loss.1} parent=0 // pred_check
    _
  $region15: #{bradley_terry_loss.1} parent=0 // pred_check_branch
    %16 = sbr.rel (0) target = $region17
  $region16: #{bradley_terry_loss.1} parent=0 // pred_region
    _
  $region17: #{bradley_terry_loss.1} parent=0 // pred_fallthru
    _
  %p17 = scmp.eq.s32.totalorder 0, 0
  // Predicated region
  $region18: #{bradley_terry_loss.1} parent=0 // pred_check
    %p18 = pneg %p17
  $region19: #{bradley_terry_loss.1} parent=0 // pred_check_branch
    %20 = sbr.rel (%p18) target = $region21
  $region20: #{bradley_terry_loss.1} parent=0 // pred_region
    %21 = vst [vmem:[%s4] sm:$0xff] 0.0
  $region21: #{bradley_terry_loss.1} parent=0 // pred_fallthru
    _
  %v22 = vld [vmem:[%s0] sm:$0xff]
  %v23 = vld [vmem:[%s1] sm:$0xff]
  %v24 = vld [vmem:[%s2] sm:$0x1]
  %26 = vset.pattern.permute.xlu0 0
  %27 = vperm.xlu0 %26, %v23
  %v28 = vpop.permute.xlu0 %27
  %v31 = vlaneseq
  %v32 = vshrl.u32 %v31, 7
  %v33 = vsub.s32 0, %v32
  %v34 = vrot.slane %v24, %v33
  %v36 = vadd.f32 %v28, %v34
  %v37 = vlog2.pop %v36
  %v38 = vmul.f32 %v37, 0.6931472
  %40 = vset.pattern.permute.xlu0 0
  %41 = vperm.xlu0 %40, %v22
  %v42 = vpop.permute.xlu0 %41
  %v44 = vsub.f32 %v42, %v38
  %v45 = vld [vmem:[%s3] sm:$0xf]
  %v46 = vunpack.c.l.bf16 %v45
  %v47 = vmul.f32 %v46, %v44
  %v48 = vld [vmem:[%s4] sm:$0xff]
  %v49 = vadd.f32 %v47, 0.0
  %v50 = vadd.f32 %v48, %v49
  %51 = vst [vmem:[%s4] sm:$0xff] %v50
  // Predicated region
  $region22: #{bradley_terry_loss.1} parent=0 // pred_check
    _
  $region23: #{bradley_terry_loss.1} parent=0 // pred_check_branch
    %53 = sbr.rel (0) target = $region25
  $region24: #{bradley_terry_loss.1} parent=0 // pred_region
    _
  $region25: #{bradley_terry_loss.1} parent=0 // pred_fallthru
    _
  // Predicated region
  $region26: #{bradley_terry_loss.1} parent=0 // pred_check
    _
  $region27: #{bradley_terry_loss.1} parent=0 // pred_check_branch
    %55 = sbr.rel (0) target = $region29
  $region28: #{bradley_terry_loss.1} parent=0 // pred_region
    _
  $region29: #{bradley_terry_loss.1} parent=0 // pred_fallthru
    _

</llo_original>
